<compile_context>
chip_gen: v5e
topology: v5e:2x2
jax: 0.10.0
libtpu: 0.0.40
codegen_flags: <defaults>
</compile_context>

<pallas_src>
import functools

import jax
import jax.numpy as jnp
from jax.experimental import pallas as pl
from jax.experimental.pallas import tpu as pltpu


def _round_up(n, m):
    return ((n + m - 1) // m) * m


def _softplus(x):
    # numerically-stable softplus: max(x,0) + log1p(exp(-|x|))
    return jnp.maximum(x, 0.0) + jnp.log1p(jnp.exp(-jnp.abs(x)))


def net_kernel(x_ref, w1_ref, b1_ref, w2_ref, b2_ref, out_ref, *, a_dim):
    x = x_ref[...]                                            # (bb, s_dim)

    # fused first layer (one MXU push): h = [relu6(a1) | relu6(c1)]
    h = jnp.clip(
        jnp.dot(x, w1_ref[...], preferred_element_type=jnp.float32) + b1_ref[...],
        0.0, 6.0)                                             # (bb, 2*hidden)

    # fused second layer (one MXU push): lin = [mu_lin | sig_lin | v]
    lin = (jnp.dot(h, w2_ref[...], preferred_element_type=jnp.float32)
           + b2_ref[...])                                     # (bb, 2*a_dim+1)

    # per-column activation; masks come from a loop-invariant (1, n_out) iota
    col = jax.lax.broadcasted_iota(jnp.int32, (1, lin.shape[-1]), 1)
    mu = 2.0 * jnp.tanh(lin)
    sigma = _softplus(lin) + 0.001
    out = jnp.where(col < a_dim, mu, jnp.where(col < 2 * a_dim, sigma, lin))
    out_ref[...] = out.astype(out_ref.dtype)


def pack_params(p, s_dim, hidden_dim, a_dim):
    """Fuse all five Linear layers into two weight blocks + two bias rows (done once)."""
    w1 = jnp.concatenate([p["wa1"], p["wc1"]], axis=1)                  # (s_dim, 2*hidden)
    b1 = jnp.concatenate([p["ba1"], p["bc1"]], axis=1)                  # (1, 2*hidden)
    top = jnp.concatenate(
        [p["wmu"], p["wsig"], jnp.zeros((hidden_dim, 1), jnp.float32)], axis=1)
    bot = jnp.concatenate(
        [jnp.zeros((hidden_dim, 2 * a_dim), jnp.float32), p["wv"]], axis=1)
    w2 = jnp.concatenate([top, bot], axis=0)                            # (2*hidden, 2*a_dim+1)
    b2 = jnp.concatenate([p["bmu"], p["bsig"], p["bv"]], axis=1)        # (1, 2*a_dim+1)
    return w1, b1, w2, b2


def net_forward(x, w1, b1, w2, b2, *, a_dim, block_b=4096, out_dtype=jnp.float32):
    """x: (B, s_dim) float32. Returns (mu, sigma, values) matching PyTorch Net.forward."""
    B, s_dim = x.shape
    h2 = w1.shape[1]
    n_out = w2.shape[1]                       # 2*a_dim + 1

    # Batch tile: as large as block_b, but guarantee >= 2 grid steps whenever the
    # batch is big enough so ("parallel",) shards rows onto both v7x TensorCores.
    if B <= 16:
        bb = B                                # single tile; block == full dim is legal
    else:
        bb = min(block_b, _round_up(pl.cdiv(B, 2), 8))

    B_pad = _round_up(B, bb)
    if B_pad != B:
        # TODO(synk): a remainder tile (or in-kernel row mask) would avoid this extra HBM pass.
        x = jnp.pad(x, ((0, B_pad - B), (0, 0)))

    # Conservative per-call VMEM estimate (double-buffered x/out tiles + intermediates
    # + resident weights); only override the scoped default when we get close to it.
    vmem_est = 4 * (2 * bb * s_dim + 2 * bb * n_out + 4 * bb * h2) \
        + 8 * (w1.size + w2.size + b1.size + b2.size)
    cp_kwargs = dict(dimension_semantics=("parallel",))
    if vmem_est > (24 << 20):
        cp_kwargs["vmem_limit_bytes"] = int(min(2 * vmem_est, 64 << 20))

    kernel = functools.partial(net_kernel, a_dim=a_dim)
    out = pl.pallas_call(
        kernel,
        out_shape=jax.ShapeDtypeStruct((B_pad, n_out), out_dtype),
        grid=(B_pad // bb,),
        in_specs=[
            pl.BlockSpec((bb, s_dim), lambda i: (i, 0)),      # batch tile of x
            pl.BlockSpec(w1.shape, lambda i: (0, 0)),         # resident fused layer-1 weights
            pl.BlockSpec(b1.shape, lambda i: (0, 0)),         # resident layer-1 biases
            pl.BlockSpec(w2.shape, lambda i: (0, 0)),         # resident fused layer-2 weights
            pl.BlockSpec(b2.shape, lambda i: (0, 0)),         # resident layer-2 biases
        ],
        out_specs=pl.BlockSpec((bb, n_out), lambda i: (i, 0)),  # narrow (2*a_dim+1)-lane slab
        compiler_params=pltpu.CompilerParams(**cp_kwargs),
    )(x, w1, b1, w2, b2)

    mu = out[:B, :a_dim]
    sigma = out[:B, a_dim:2 * a_dim]
    values = out[:B, 2 * a_dim:2 * a_dim + 1]
    return mu, sigma, values


def init_params(key, s_dim, hidden_dim, a_dim):
    """Deterministic synthetic init mimicking set_init (normal(0, 0.1) weights, 0.1 biases)."""
    ks = jax.random.split(key, 5)

    def layer(k, fan_in, fan_out):
        w = 0.1 * jax.random.normal(k, (fan_in, fan_out), dtype=jnp.float32)  # stored as (in, out)
        b = jnp.full((1, fan_out), 0.1, dtype=jnp.float32)
        return w, b

    wa1, ba1 = layer(ks[0], s_dim, hidden_dim)
    wmu, bmu = layer(ks[1], hidden_dim, a_dim)
    wsig, bsig = layer(ks[2], hidden_dim, a_dim)
    wc1, bc1 = layer(ks[3], s_dim, hidden_dim)
    wv, bv = layer(ks[4], hidden_dim, 1)

    return dict(wa1=wa1, ba1=ba1, wmu=wmu, bmu=bmu, wsig=wsig, bsig=bsig,
                wc1=wc1, bc1=bc1, wv=wv, bv=bv)


def net_forward_ref(x, p):
    """Pure-JAX reference for correctness check (unfused weights)."""
    a1 = jnp.clip(x @ p["wa1"] + p["ba1"], 0.0, 6.0)
    mu = 2.0 * jnp.tanh(a1 @ p["wmu"] + p["bmu"])
    sigma = jax.nn.softplus(a1 @ p["wsig"] + p["bsig"]) + 0.001
    c1 = jnp.clip(x @ p["wc1"] + p["bc1"], 0.0, 6.0)
    values = c1 @ p["wv"] + p["bv"]
    return mu, sigma, values


if __name__ == "__main__":
    key = jax.random.PRNGKey(0)
    k_x, k_p, k_x2 = jax.random.split(key, 3)

    B, S_DIM, HIDDEN, A_DIM = 8, 16, 32, 4
    x = jax.random.normal(k_x, (B, S_DIM), dtype=jnp.float32)
    params = init_params(k_p, S_DIM, HIDDEN, A_DIM)

    # one-time weight fusion (layout plumbing done outside the kernel)
    w1, b1, w2, b2 = pack_params(params, S_DIM, HIDDEN, A_DIM)

    # keep slicing inside the same jit so XLA fuses it around the pallas_call
    fwd = jax.jit(functools.partial(net_forward, a_dim=A_DIM))

    mu, sigma, values = fwd(x, w1, b1, w2, b2)
    jax.block_until_ready((mu, sigma, values))

    mu_r, sigma_r, values_r = net_forward_ref(x, params)
    assert jnp.allclose(mu, mu_r, atol=1e-5), "mu mismatch"
    assert jnp.allclose(sigma, sigma_r, atol=1e-5), "sigma mismatch"
    assert jnp.allclose(values, values_r, atol=1e-5), "values mismatch"

    # also exercise the multi-step grid path (>=2 grid steps, batch padding)
    B2 = 1000
    x2 = jax.random.normal(k_x2, (B2, S_DIM), dtype=jnp.float32)
    mu2, sigma2, values2 = fwd(x2, w1, b1, w2, b2)
    jax.block_until_ready((mu2, sigma2, values2))
    mu2_r, sigma2_r, values2_r = net_forward_ref(x2, params)
    assert jnp.allclose(mu2, mu2_r, atol=1e-5), "mu mismatch (large batch)"
    assert jnp.allclose(sigma2, sigma2_r, atol=1e-5), "sigma mismatch (large batch)"
    assert jnp.allclose(values2, values2_r, atol=1e-5), "values mismatch (large batch)"

    print("KERNEL_OK")
</pallas_src>

<mosaic_0001>
module attributes {stable_mosaic.version = 11 : i64} {
  func.func @net_kernel(%arg0: i32, %arg1: memref<8x16xf32, #tpu.memory_space<vmem>>, %arg2: memref<16x64xf32, #tpu.memory_space<vmem>>, %arg3: memref<1x64xf32, #tpu.memory_space<vmem>>, %arg4: memref<64x9xf32, #tpu.memory_space<vmem>>, %arg5: memref<1x9xf32, #tpu.memory_space<vmem>>, %arg6: memref<8x9xf32, #tpu.memory_space<vmem>>) attributes {dimension_semantics = [#tpu.dimension_semantics<parallel>], iteration_bounds = array<i64: 1>, scalar_prefetch = 0 : i64, scratch_operands = 0 : i64, tpu.core_type = #tpu.core_type<tc>, window_params = [{transform_indices = @transform_0, window_bounds = array<i64: 8, 16>}, {pipeline_mode = #tpu.pipeline_mode<synchronous>, transform_indices = @transform_1, window_bounds = array<i64: 16, 64>}, {pipeline_mode = #tpu.pipeline_mode<synchronous>, transform_indices = @transform_2, window_bounds = array<i64: 1, 64>}, {pipeline_mode = #tpu.pipeline_mode<synchronous>, transform_indices = @transform_3, window_bounds = array<i64: 64, 9>}, {pipeline_mode = #tpu.pipeline_mode<synchronous>, transform_indices = @transform_4, window_bounds = array<i64: 1, 9>}, {transform_indices = @transform_5, window_bounds = array<i64: 8, 9>}]} {
    %c0 = arith.constant 0 : index
    %c0_0 = arith.constant 0 : index
    %0 = vector.load %arg1[%c0, %c0_0] : memref<8x16xf32, #tpu.memory_space<vmem>>, vector<8x16xf32>
    %c0_1 = arith.constant 0 : index
    %c0_2 = arith.constant 0 : index
    %1 = vector.load %arg2[%c0_1, %c0_2] : memref<16x64xf32, #tpu.memory_space<vmem>>, vector<16x64xf32>
    %cst = arith.constant dense<0.000000e+00> : vector<8x64xf32>
    %2 = tpu.matmul %0, %1, %cst {dimension_numbers = #tpu.dot_dimension_numbers<[1], [0], [0], [1], [0, 0, 1, 1], [], []>} : vector<8x16xf32>, vector<16x64xf32>, vector<8x64xf32> -> vector<8x64xf32>
    %c0_3 = arith.constant 0 : index
    %c0_4 = arith.constant 0 : index
    %3 = vector.load %arg3[%c0_3, %c0_4] : memref<1x64xf32, #tpu.memory_space<vmem>>, vector<1x64xf32>
    %4 = vector.broadcast %3 : vector<1x64xf32> to vector<8x64xf32>
    %5 = arith.addf %2, %4 : vector<8x64xf32>
    %cst_5 = arith.constant 0.000000e+00 : f32
    %cst_6 = arith.constant 6.000000e+00 : f32
    %6 = vector.broadcast %cst_5 : f32 to vector<8x64xf32>
    %7 = arith.maximumf %6, %5 : vector<8x64xf32>
    %8 = vector.broadcast %cst_6 : f32 to vector<8x64xf32>
    %9 = arith.minimumf %8, %7 : vector<8x64xf32>
    %c0_7 = arith.constant 0 : index
    %c0_8 = arith.constant 0 : index
    %10 = vector.load %arg4[%c0_7, %c0_8] : memref<64x9xf32, #tpu.memory_space<vmem>>, vector<64x9xf32>
    %cst_9 = arith.constant dense<0.000000e+00> : vector<8x9xf32>
    %11 = tpu.matmul %9, %10, %cst_9 {dimension_numbers = #tpu.dot_dimension_numbers<[1], [0], [0], [1], [0, 0, 1, 1], [], []>} : vector<8x64xf32>, vector<64x9xf32>, vector<8x9xf32> -> vector<8x9xf32>
    %c0_10 = arith.constant 0 : index
    %c0_11 = arith.constant 0 : index
    %12 = vector.load %arg5[%c0_10, %c0_11] : memref<1x9xf32, #tpu.memory_space<vmem>>, vector<1x9xf32>
    %13 = vector.broadcast %12 : vector<1x9xf32> to vector<8x9xf32>
    %14 = arith.addf %11, %13 : vector<8x9xf32>
    %15 = tpu.iota {dimensions = array<i32: 1>} : vector<1x9xi32>
    %16 = math.tanh %14 : vector<8x9xf32>
    %cst_12 = arith.constant 2.000000e+00 : f32
    %17 = vector.broadcast %cst_12 : f32 to vector<8x9xf32>
    %18 = arith.mulf %17, %16 : vector<8x9xf32>
    %cst_13 = arith.constant 0.000000e+00 : f32
    %19 = vector.broadcast %cst_13 : f32 to vector<8x9xf32>
    %20 = arith.maximumf %14, %19 : vector<8x9xf32>
    %21 = math.absf %14 : vector<8x9xf32>
    %cst_14 = arith.constant 0.000000e+00 : f32
    %22 = vector.broadcast %cst_14 : f32 to vector<8x9xf32>
    %23 = arith.subf %22, %21 : vector<8x9xf32>
    %24 = math.exp %23 : vector<8x9xf32>
    %25 = math.log1p %24 : vector<8x9xf32>
    %26 = arith.addf %20, %25 : vector<8x9xf32>
    %cst_15 = arith.constant 1.000000e-03 : f32
    %27 = vector.broadcast %cst_15 : f32 to vector<8x9xf32>
    %28 = arith.addf %26, %27 : vector<8x9xf32>
    %c4_i32 = arith.constant 4 : i32
    %29 = vector.broadcast %c4_i32 : i32 to vector<1x9xi32>
    %30 = arith.cmpi slt, %15, %29 : vector<1x9xi32>
    %c8_i32 = arith.constant 8 : i32
    %31 = vector.broadcast %c8_i32 : i32 to vector<1x9xi32>
    %32 = arith.cmpi slt, %15, %31 : vector<1x9xi32>
    %33 = vector.shape_cast %32 : vector<1x9xi1> to vector<1x9xi1>
    %34 = vector.broadcast %33 : vector<1x9xi1> to vector<8x9xi1>
    %35 = arith.select %34, %28, %14 : vector<8x9xi1>, vector<8x9xf32>
    %36 = vector.shape_cast %30 : vector<1x9xi1> to vector<1x9xi1>
    %37 = vector.broadcast %36 : vector<1x9xi1> to vector<8x9xi1>
    %38 = arith.select %37, %18, %35 : vector<8x9xi1>, vector<8x9xf32>
    %c0_16 = arith.constant 0 : index
    %c0_17 = arith.constant 0 : index
    %39 = vector.load %arg6[%c0_16, %c0_17] : memref<8x9xf32, #tpu.memory_space<vmem>>, vector<8x9xf32>
    tpu.vector_store %arg6[%c0_16, %c0_17], %38 {strides = array<i32>} : memref<8x9xf32, #tpu.memory_space<vmem>>, vector<8x9xf32>,
    return
  }
  func.func @transform_0(%arg0: i32) -> (i32, i32) {
    %c0_i32 = arith.constant 0 : i32
    %c0_i32_0 = arith.constant 0 : i32
    return %arg0, %c0_i32 : i32, i32
  }
  func.func @transform_1(%arg0: i32) -> (i32, i32) {
    %c0_i32 = arith.constant 0 : i32
    %c0_i32_0 = arith.constant 0 : i32
    %c0_i32_1 = arith.constant 0 : i32
    return %c0_i32, %c0_i32_0 : i32, i32
  }
  func.func @transform_2(%arg0: i32) -> (i32, i32) {
    %c0_i32 = arith.constant 0 : i32
    %c0_i32_0 = arith.constant 0 : i32
    %c0_i32_1 = arith.constant 0 : i32
    return %c0_i32, %c0_i32_0 : i32, i32
  }
  func.func @transform_3(%arg0: i32) -> (i32, i32) {
    %c0_i32 = arith.constant 0 : i32
    %c0_i32_0 = arith.constant 0 : i32
    %c0_i32_1 = arith.constant 0 : i32
    return %c0_i32, %c0_i32_0 : i32, i32
  }
  func.func @transform_4(%arg0: i32) -> (i32, i32) {
    %c0_i32 = arith.constant 0 : i32
    %c0_i32_0 = arith.constant 0 : i32
    %c0_i32_1 = arith.constant 0 : i32
    return %c0_i32, %c0_i32_0 : i32, i32
  }
  func.func @transform_5(%arg0: i32) -> (i32, i32) {
    %c0_i32 = arith.constant 0 : i32
    %c0_i32_0 = arith.constant 0 : i32
    return %arg0, %c0_i32 : i32, i32
  }
}

</mosaic_0001>

<llo_original>
// kernel: net_forward.1
$region0: #{net_forward.1}
  #allocation0 [shape = 'u32[]', space=smem, size = 0x4, offset = 0x4, fixed_abs, tag = 'smem constant byte address 0x4 - core index']
  #allocation1 [shape = 'u32[72,128]{1,0:T(1,128)}', space=vmem, size = 0x9000, scoped, tag = 'internal scratch']
  %s0 = inlined_call_operand.vmem [shape: f32[8,16], index: 0, kind: input, shape index: {}]
  %s1 = inlined_call_operand.vmem [shape: f32[16,64], index: 1, kind: input, shape index: {}]
  %s2 = inlined_call_operand.vmem [shape: f32[1,64], index: 2, kind: input, shape index: {}]
  %s3 = inlined_call_operand.vmem [shape: f32[64,9], index: 3, kind: input, shape index: {}]
  %s4 = inlined_call_operand.vmem [shape: f32[1,9], index: 4, kind: input, shape index: {}]
  %s5 = inlined_call_operand.vmem [shape: f32[8,9], index: 5, kind: output, shape index: {}]
  %s6 = sld [smem:[#allocation0]]
  $region30: #{net_forward.1} parent=0
    _
  %s8 = ssub.s32 1, %s6
  %s9 = scalar_select 0, %s8, %s6
  // Predicated region
  $region2: #{net_forward.1} parent=0 // pred_check
    _
  $region3: #{net_forward.1} parent=0 // pred_check_branch
    %11 = sbr.rel (0) target = $region5
  $region4: #{net_forward.1} parent=0 // pred_region
    _
  $region5: #{net_forward.1} parent=0 // pred_fallthru
    _
  // Predicated region
  $region6: #{net_forward.1} parent=0 // pred_check
    _
  $region7: #{net_forward.1} parent=0 // pred_check_branch
    %13 = sbr.rel (0) target = $region9
  $region8: #{net_forward.1} parent=0 // pred_region
    _
  $region9: #{net_forward.1} parent=0 // pred_fallthru
    _
  // Predicated region
  $region10: #{net_forward.1} parent=0 // pred_check
    _
  $region11: #{net_forward.1} parent=0 // pred_check_branch
    %15 = sbr.rel (0) target = $region13
  $region12: #{net_forward.1} parent=0 // pred_region
    _
  $region13: #{net_forward.1} parent=0 // pred_fallthru
    _
  // Predicated region
  $region14: #{net_forward.1} parent=0 // pred_check
    _
  $region15: #{net_forward.1} parent=0 // pred_check_branch
    %17 = sbr.rel (0) target = $region17
  $region16: #{net_forward.1} parent=0 // pred_region
    _
  $region17: #{net_forward.1} parent=0 // pred_fallthru
    _
  // Predicated region
  $region18: #{net_forward.1} parent=0 // pred_check
    _
  $region19: #{net_forward.1} parent=0 // pred_check_branch
    %19 = sbr.rel (0) target = $region21
  $region20: #{net_forward.1} parent=0 // pred_region
    _
  $region21: #{net_forward.1} parent=0 // pred_fallthru
    _
  %v20 = vld [vmem:[%s0] sm:$0xff]
  %v21 = vld [vmem:[%s1] sm:$0xff]
  %v22 = vld [vmem:[%s1 + $0x8] sm:$0xff]
  %v23 = vld [vmem:[%s2] sm:$0x1]
  %v25 = vperm.slane %v23, 0
  %vm27 = vcmask 130048
  %v29 = vsel %vm27, %v20, 0
  %31 = vmatpush.msra.mxu0 0.0
  %32 = vmatpush.msra.mxu0 0.0
  %33 = vmatpush.msra.mxu0 0.0
  %34 = vmatpush.msra.mxu0 0.0
  %35 = vmatpush.msra.mxu0 0.0
  %36 = vmatpush.msra.mxu0 0.0
  %37 = vmatpush.msra.mxu0 0.0
  %38 = vmatpush.msra.mxu0 0.0
  %39 = vmatpush.msra.mxu0 0.0
  %40 = vmatpush.msra.mxu0 0.0
  %41 = vmatpush.msra.mxu0 0.0
  %42 = vmatpush.msra.mxu0 0.0
  %43 = vmatpush.msra.mxu0 0.0
  %44 = vmatpush.msra.mxu0 0.0
  %45 = vmatpush.msra.mxu0 %v22
  %46 = vmatpush.msra.mxu0 %v21
  %47 = vmatmul.f32.gmra.mxu0 %v29
  %v48 = vpop.f32.mrf.mxu0
  %v49 = vadd.f32 %v25, %v48
  %50 = vdwg.mxu0
  %v51 = vmax.f32 %v49, 0.0
  %v52 = vmin.f32 %v51, 6.0
  %v53 = vld [vmem:[%s3] sm:$0xff]
  %v54 = vld [vmem:[%s3 + $0x8] sm:$0xff]
  %v55 = vld [vmem:[%s3 + $0x10] sm:$0xff]
  %v56 = vld [vmem:[%s3 + $0x18] sm:$0xff]
  %v57 = vld [vmem:[%s3 + $0x20] sm:$0xff]
  %v58 = vld [vmem:[%s3 + $0x28] sm:$0xff]
  %v59 = vld [vmem:[%s3 + $0x30] sm:$0xff]
  %v60 = vld [vmem:[%s3 + $0x38] sm:$0xff]
  %v61 = vld [vmem:[%s4] sm:$0x1]
  %v63 = vperm.slane %v61, 0
  %vm65 = vcmask 523264
  %v67 = vsel %vm65, %v52, 0
  %69 = vmatpush.msra.mxu0 0.0
  %70 = vmatpush.msra.mxu0 0.0
  %71 = vmatpush.msra.mxu0 0.0
  %72 = vmatpush.msra.mxu0 0.0
  %73 = vmatpush.msra.mxu0 0.0
  %74 = vmatpush.msra.mxu0 0.0
  %75 = vmatpush.msra.mxu0 0.0
  %76 = vmatpush.msra.mxu0 0.0
  %77 = vmatpush.msra.mxu0 %v60
  %78 = vmatpush.msra.mxu0 %v59
  %79 = vmatpush.msra.mxu0 %v58
  %80 = vmatpush.msra.mxu0 %v57
  %81 = vmatpush.msra.mxu0 %v56
  %82 = vmatpush.msra.mxu0 %v55
  %83 = vmatpush.msra.mxu0 %v54
  %84 = vmatpush.msra.mxu0 %v53
  %85 = vmatmul.f32.gmra.mxu0 %v67
  %v86 = vpop.f32.mrf.mxu0
  %v87 = vadd.f32 %v63, %v86
  %88 = vdwg.mxu0
  %v89 = vlaneseq
  %v90 = vand.u32 %v89, 127
  %v91 = vtanh.pop %v87
  %v92 = vmul.f32 %v91, 2.0
  %v93 = vmax.f32 %v87, 0.0
  %v94 = vand.u32 2147483647, %v87
  %v95 = vsub.f32 0.0, %v94
  %v96 = vmul.f32 %v95, 1.442695
  %v97 = vpow.pop %v96
  %v98 = vadd.f32 %v97, 1.0
  %v99 = vlog2.pop %v98
  %v100 = vmul.f32 %v99, 0.6931472
  %v101 = vmul.f32 -0.5, %v97
  %v102 = vadd.f32 %v101, 1.0
  %v103 = vmul.f32 %v102, %v97
  %v104 = vand.u32 2147483647, %v97
  %vm105 = vcmp.lt.f32.partialorder %v104, 0.0004427343
  %v106 = vsel %vm105, %v103, %v100
  %v107 = vadd.f32 %v93, %v106
  %v108 = vadd.f32 %v107, 0.001
  %vm109 = vcmp.lt.s32.totalorder %v90, 4
  %vm110 = vcmp.lt.s32.totalorder %v90, 8
  %v111 = vsel %vm110, 1, 0
  %vm112 = vcmp.eq.s32.totalorder %v111, 1
  %v113 = vsel %vm112, %v108, %v87
  %v114 = vsel %vm109, 1, 0
  %vm115 = vcmp.eq.s32.totalorder %v114, 1
  %v116 = vsel %vm115, %v92, %v113
  %vm117 = vcmask 72704
  %118 = vst.msk [vmem:[%s5] sm:$0xff] %vm117, %v116
  // Predicated region
  $region22: #{net_forward.1} parent=0 // pred_check
    _
  $region23: #{net_forward.1} parent=0 // pred_check_branch
    %120 = sbr.rel (0) target = $region25
  $region24: #{net_forward.1} parent=0 // pred_region
    _
  $region25: #{net_forward.1} parent=0 // pred_fallthru
    _
  // Predicated region
  $region26: #{net_forward.1} parent=0 // pred_check
    _
  $region27: #{net_forward.1} parent=0 // pred_check_branch
    %122 = sbr.rel (0) target = $region29
  $region28: #{net_forward.1} parent=0 // pred_region
    _
  $region29: #{net_forward.1} parent=0 // pred_fallthru
    _

</llo_original>
